<compile_context>
chip_gen: v6e
topology: v6e:2x2x1
jax: 0.10.0
libtpu: 0.0.40
codegen_flags: <defaults>
</compile_context>

<pallas_src>
import jax
import jax.numpy as jnp
from jax.experimental import pallas as pl
from jax.experimental.pallas import tpu as pltpu

BN_EPS = 1e-5


def _tabnet_layer(x, wz, bz, g, beta, out_dim):
    # One fused matmul for both branches: (B, in) @ (in, 2*out).
    z = jnp.dot(x, wz, preferred_element_type=jnp.float32) + bz
    h = z[:, :out_dim]        # fc branch
    a = z[:, out_dim:]        # attention branch

    # BatchNorm1d, training mode, one-pass stats (biased variance).
    inv_b = 1.0 / h.shape[0]
    mean = jnp.sum(h, axis=0, keepdims=True) * inv_b
    mean_sq = jnp.sum(h * h, axis=0, keepdims=True) * inv_b
    var = jnp.maximum(mean_sq - mean * mean, 0.0)
    h_bn = (h - mean) * jax.lax.rsqrt(var + BN_EPS) * g + beta
    h_relu = jnp.maximum(h_bn, 0.0)

    # Softmax over features: EUP exp + approx reciprocal (own VLIW slot).
    a = a - jnp.max(a, axis=-1, keepdims=True)
    ea = jnp.exp(a)
    attn = ea * pl.reciprocal(jnp.sum(ea, axis=-1, keepdims=True), approx=True)
    return h_relu * attn


def tablenet_kernel(x_ref,
                    wz0_ref, bz0_ref, g0_ref, be0_ref,
                    wz1_ref, bz1_ref, g1_ref, be1_ref,
                    wo_ref, bo_ref,
                    o_ref):
    out_dim = g0_ref.shape[-1]
    x = x_ref[...].astype(jnp.float32)
    x = _tabnet_layer(x, wz0_ref[...], bz0_ref[...], g0_ref[...], be0_ref[...],
                      out_dim)
    x = _tabnet_layer(x, wz1_ref[...], bz1_ref[...], g1_ref[...], be1_ref[...],
                      out_dim)
    # Head (output_dim -> 1) off the MXU: VPU mul + lane reduce, stored as a
    # lane-dense (1, B) row.  wo_ref is the head weight as a (1, out_dim) row.
    out = jnp.sum(x * wo_ref[...], axis=-1)[None, :] + bo_ref[...]  # (1, B)
    o_ref[...] = out.astype(o_ref.dtype)


def tablenet_forward(x, params):
    """x: (B, input_dim) f32.  params: flat list matching the kernel signature."""
    B = x.shape[0]
    n_in = 1 + len(params)
    vmem = pl.BlockSpec(memory_space=pltpu.MemorySpace.VMEM)
    out = pl.pallas_call(
        tablenet_kernel,
        out_shape=jax.ShapeDtypeStruct((1, B), jnp.float32),
        in_specs=[vmem] * n_in,
        out_specs=vmem,
    )(x, *params)
    # PyTorch does x.squeeze(): (B, 1) -> (B,).  Kernel already produced (1, B).
    return out[0]


def init_params(key, input_dim, output_dim):
    """Deterministic synthetic parameters (PyTorch-like small uniform init),
    packed for the fused-layer kernel."""
    ks = jax.random.split(key, 5)

    def lin(k, fan_in, fan_out):
        bound = 1.0 / (fan_in ** 0.5)
        kw, kb = jax.random.split(k)
        w = jax.random.uniform(kw, (fan_in, fan_out), jnp.float32, -bound, bound)
        b = jax.random.uniform(kb, (1, fan_out), jnp.float32, -bound, bound)
        return w, b

    # layer 0: input_dim -> output_dim (fc + attention packed side-by-side)
    w0, b0 = lin(ks[0], input_dim, output_dim)
    wa0, ba0 = lin(ks[1], input_dim, output_dim)
    wz0 = jnp.concatenate([w0, wa0], axis=1)
    bz0 = jnp.concatenate([b0, ba0], axis=1)
    g0 = jnp.ones((1, output_dim), jnp.float32)
    be0 = jnp.zeros((1, output_dim), jnp.float32)

    # layer 1: output_dim -> output_dim
    w1, b1 = lin(ks[2], output_dim, output_dim)
    wa1, ba1 = lin(ks[3], output_dim, output_dim)
    wz1 = jnp.concatenate([w1, wa1], axis=1)
    bz1 = jnp.concatenate([b1, ba1], axis=1)
    g1 = jnp.ones((1, output_dim), jnp.float32)
    be1 = jnp.zeros((1, output_dim), jnp.float32)

    # head: output_dim -> 1, stored as a (1, output_dim) row for the VPU path.
    wo, bo = lin(ks[4], output_dim, 1)
    wo_row = wo.T          # (1, output_dim)
    bo_sc = bo             # (1, 1)

    return [wz0, bz0, g0, be0, wz1, bz1, g1, be1, wo_row, bo_sc]


def tablenet_reference(x, params):
    """Pure-JAX reference (unfused math) for a tolerance check."""
    wz0, bz0, g0, be0, wz1, bz1, g1, be1, wo_row, bo = params

    def layer(x, wz, bz, g, beta):
        d = g.shape[-1]
        z = x @ wz + bz
        h, a = z[:, :d], z[:, d:]
        mean = h.mean(axis=0, keepdims=True)
        var = ((h - mean) ** 2).mean(axis=0, keepdims=True)
        h_bn = (h - mean) / jnp.sqrt(var + BN_EPS) * g + beta
        return jnp.maximum(h_bn, 0.0) * jax.nn.softmax(a, axis=-1)

    x = layer(x, wz0, bz0, g0, be0)
    x = layer(x, wz1, bz1, g1, be1)
    return jnp.sum(x * wo_row, axis=-1) + bo[0, 0]


if __name__ == "__main__":
    B, INPUT_DIM, OUTPUT_DIM = 8, 16, 32

    key = jax.random.PRNGKey(0)
    kx, kp = jax.random.split(key)
    x = jax.random.normal(kx, (B, INPUT_DIM), dtype=jnp.float32)
    params = init_params(kp, INPUT_DIM, OUTPUT_DIM)

    y = tablenet_forward(x, params)
    jax.block_until_ready(y)
    assert y.shape == (B,), y.shape

    y_ref = tablenet_reference(x, params)
    assert jnp.allclose(y, y_ref, rtol=1e-2, atol=1e-3), (y, y_ref)

    print("KERNEL_OK")
</pallas_src>

<mosaic_0001>
module attributes {stable_mosaic.version = 11 : i64} {
  func.func @tablenet_kernel(%arg0: memref<8x16xf32, #tpu.memory_space<vmem>>, %arg1: memref<16x64xf32, #tpu.memory_space<vmem>>, %arg2: memref<1x64xf32, #tpu.memory_space<vmem>>, %arg3: memref<1x32xf32, #tpu.memory_space<vmem>>, %arg4: memref<1x32xf32, #tpu.memory_space<vmem>>, %arg5: memref<32x64xf32, #tpu.memory_space<vmem>>, %arg6: memref<1x64xf32, #tpu.memory_space<vmem>>, %arg7: memref<1x32xf32, #tpu.memory_space<vmem>>, %arg8: memref<1x32xf32, #tpu.memory_space<vmem>>, %arg9: memref<1x32xf32, #tpu.memory_space<vmem>>, %arg10: memref<1x1xf32, #tpu.memory_space<vmem>>, %arg11: memref<1x8xf32, #tpu.memory_space<vmem>>) attributes {dimension_semantics = [], scalar_prefetch = 0 : i64, scratch_operands = 0 : i64, tpu.core_type = #tpu.core_type<tc>} {
    %c0 = arith.constant 0 : index
    %c0_0 = arith.constant 0 : index
    %0 = vector.load %arg0[%c0, %c0_0] : memref<8x16xf32, #tpu.memory_space<vmem>>, vector<8x16xf32>
    %c0_1 = arith.constant 0 : index
    %c0_2 = arith.constant 0 : index
    %1 = vector.load %arg1[%c0_1, %c0_2] : memref<16x64xf32, #tpu.memory_space<vmem>>, vector<16x64xf32>
    %c0_3 = arith.constant 0 : index
    %c0_4 = arith.constant 0 : index
    %2 = vector.load %arg2[%c0_3, %c0_4] : memref<1x64xf32, #tpu.memory_space<vmem>>, vector<1x64xf32>
    %c0_5 = arith.constant 0 : index
    %c0_6 = arith.constant 0 : index
    %3 = vector.load %arg3[%c0_5, %c0_6] : memref<1x32xf32, #tpu.memory_space<vmem>>, vector<1x32xf32>
    %c0_7 = arith.constant 0 : index
    %c0_8 = arith.constant 0 : index
    %4 = vector.load %arg4[%c0_7, %c0_8] : memref<1x32xf32, #tpu.memory_space<vmem>>, vector<1x32xf32>
    %cst = arith.constant dense<0.000000e+00> : vector<8x64xf32>
    %5 = tpu.matmul %0, %1, %cst {dimension_numbers = #tpu.dot_dimension_numbers<[1], [0], [0], [1], [0, 0, 1, 1], [], []>} : vector<8x16xf32>, vector<16x64xf32>, vector<8x64xf32> -> vector<8x64xf32>
    %6 = vector.broadcast %2 : vector<1x64xf32> to vector<8x64xf32>
    %7 = arith.addf %5, %6 : vector<8x64xf32>
    %8 = vector.extract_strided_slice %7 {offsets = [0, 0], sizes = [8, 32], strides = [1, 1]} : vector<8x64xf32> to vector<8x32xf32>
    %9 = vector.extract_strided_slice %7 {offsets = [0, 32], sizes = [8, 32], strides = [1, 1]} : vector<8x64xf32> to vector<8x32xf32>
    %cst_9 = arith.constant dense<0.000000e+00> : vector<32xf32>
    %10 = vector.multi_reduction <add>, %8, %cst_9 [0] : vector<8x32xf32> to vector<32xf32>
    %11 = vector.shape_cast %10 : vector<32xf32> to vector<1x32xf32>
    %cst_10 = arith.constant 1.250000e-01 : f32
    %12 = vector.broadcast %cst_10 : f32 to vector<1x32xf32>
    %13 = arith.mulf %11, %12 : vector<1x32xf32>
    %14 = arith.mulf %8, %8 : vector<8x32xf32>
    %cst_11 = arith.constant dense<0.000000e+00> : vector<32xf32>
    %15 = vector.multi_reduction <add>, %14, %cst_11 [0] : vector<8x32xf32> to vector<32xf32>
    %16 = vector.shape_cast %15 : vector<32xf32> to vector<1x32xf32>
    %cst_12 = arith.constant 1.250000e-01 : f32
    %17 = vector.broadcast %cst_12 : f32 to vector<1x32xf32>
    %18 = arith.mulf %16, %17 : vector<1x32xf32>
    %19 = arith.mulf %13, %13 : vector<1x32xf32>
    %20 = arith.subf %18, %19 : vector<1x32xf32>
    %cst_13 = arith.constant 0.000000e+00 : f32
    %21 = vector.broadcast %cst_13 : f32 to vector<1x32xf32>
    %22 = arith.maximumf %20, %21 : vector<1x32xf32>
    %23 = vector.broadcast %13 : vector<1x32xf32> to vector<8x32xf32>
    %24 = arith.subf %8, %23 : vector<8x32xf32>
    %cst_14 = arith.constant 9.99999974E-6 : f32
    %25 = vector.broadcast %cst_14 : f32 to vector<1x32xf32>
    %26 = arith.addf %22, %25 : vector<1x32xf32>
    %27 = math.rsqrt %26 : vector<1x32xf32>
    %28 = vector.broadcast %27 : vector<1x32xf32> to vector<8x32xf32>
    %29 = arith.mulf %24, %28 : vector<8x32xf32>
    %30 = vector.broadcast %3 : vector<1x32xf32> to vector<8x32xf32>
    %31 = arith.mulf %29, %30 : vector<8x32xf32>
    %32 = vector.broadcast %4 : vector<1x32xf32> to vector<8x32xf32>
    %33 = arith.addf %31, %32 : vector<8x32xf32>
    %cst_15 = arith.constant 0.000000e+00 : f32
    %34 = vector.broadcast %cst_15 : f32 to vector<8x32xf32>
    %35 = arith.maximumf %33, %34 : vector<8x32xf32>
    %cst_16 = arith.constant dense<0xFF800000> : vector<8xf32>
    %36 = vector.multi_reduction <maximumf>, %9, %cst_16 [1] : vector<8x32xf32> to vector<8xf32>
    %37 = vector.shape_cast %36 : vector<8xf32> to vector<8x1xf32>
    %38 = vector.broadcast %37 : vector<8x1xf32> to vector<8x32xf32>
    %39 = arith.subf %9, %38 : vector<8x32xf32>
    %40 = math.exp %39 : vector<8x32xf32>
    %cst_17 = arith.constant dense<0.000000e+00> : vector<8xf32>
    %41 = vector.multi_reduction <add>, %40, %cst_17 [1] : vector<8x32xf32> to vector<8xf32>
    %42 = vector.shape_cast %41 : vector<8xf32> to vector<8x1xf32>
    %43 = tpu.reciprocal %42 {approx = true} : vector<8x1xf32> -> vector<8x1xf32>
    %44 = vector.broadcast %43 : vector<8x1xf32> to vector<8x32xf32>
    %45 = arith.mulf %40, %44 : vector<8x32xf32>
    %46 = arith.mulf %35, %45 : vector<8x32xf32>
    %c0_18 = arith.constant 0 : index
    %c0_19 = arith.constant 0 : index
    %47 = vector.load %arg5[%c0_18, %c0_19] : memref<32x64xf32, #tpu.memory_space<vmem>>, vector<32x64xf32>
    %c0_20 = arith.constant 0 : index
    %c0_21 = arith.constant 0 : index
    %48 = vector.load %arg6[%c0_20, %c0_21] : memref<1x64xf32, #tpu.memory_space<vmem>>, vector<1x64xf32>
    %c0_22 = arith.constant 0 : index
    %c0_23 = arith.constant 0 : index
    %49 = vector.load %arg7[%c0_22, %c0_23] : memref<1x32xf32, #tpu.memory_space<vmem>>, vector<1x32xf32>
    %c0_24 = arith.constant 0 : index
    %c0_25 = arith.constant 0 : index
    %50 = vector.load %arg8[%c0_24, %c0_25] : memref<1x32xf32, #tpu.memory_space<vmem>>, vector<1x32xf32>
    %cst_26 = arith.constant dense<0.000000e+00> : vector<8x64xf32>
    %51 = tpu.matmul %46, %47, %cst_26 {dimension_numbers = #tpu.dot_dimension_numbers<[1], [0], [0], [1], [0, 0, 1, 1], [], []>} : vector<8x32xf32>, vector<32x64xf32>, vector<8x64xf32> -> vector<8x64xf32>
    %52 = vector.broadcast %48 : vector<1x64xf32> to vector<8x64xf32>
    %53 = arith.addf %51, %52 : vector<8x64xf32>
    %54 = vector.extract_strided_slice %53 {offsets = [0, 0], sizes = [8, 32], strides = [1, 1]} : vector<8x64xf32> to vector<8x32xf32>
    %55 = vector.extract_strided_slice %53 {offsets = [0, 32], sizes = [8, 32], strides = [1, 1]} : vector<8x64xf32> to vector<8x32xf32>
    %cst_27 = arith.constant dense<0.000000e+00> : vector<32xf32>
    %56 = vector.multi_reduction <add>, %54, %cst_27 [0] : vector<8x32xf32> to vector<32xf32>
    %57 = vector.shape_cast %56 : vector<32xf32> to vector<1x32xf32>
    %cst_28 = arith.constant 1.250000e-01 : f32
    %58 = vector.broadcast %cst_28 : f32 to vector<1x32xf32>
    %59 = arith.mulf %57, %58 : vector<1x32xf32>
    %60 = arith.mulf %54, %54 : vector<8x32xf32>
    %cst_29 = arith.constant dense<0.000000e+00> : vector<32xf32>
    %61 = vector.multi_reduction <add>, %60, %cst_29 [0] : vector<8x32xf32> to vector<32xf32>
    %62 = vector.shape_cast %61 : vector<32xf32> to vector<1x32xf32>
    %cst_30 = arith.constant 1.250000e-01 : f32
    %63 = vector.broadcast %cst_30 : f32 to vector<1x32xf32>
    %64 = arith.mulf %62, %63 : vector<1x32xf32>
    %65 = arith.mulf %59, %59 : vector<1x32xf32>
    %66 = arith.subf %64, %65 : vector<1x32xf32>
    %cst_31 = arith.constant 0.000000e+00 : f32
    %67 = vector.broadcast %cst_31 : f32 to vector<1x32xf32>
    %68 = arith.maximumf %66, %67 : vector<1x32xf32>
    %69 = vector.broadcast %59 : vector<1x32xf32> to vector<8x32xf32>
    %70 = arith.subf %54, %69 : vector<8x32xf32>
    %cst_32 = arith.constant 9.99999974E-6 : f32
    %71 = vector.broadcast %cst_32 : f32 to vector<1x32xf32>
    %72 = arith.addf %68, %71 : vector<1x32xf32>
    %73 = math.rsqrt %72 : vector<1x32xf32>
    %74 = vector.broadcast %73 : vector<1x32xf32> to vector<8x32xf32>
    %75 = arith.mulf %70, %74 : vector<8x32xf32>
    %76 = vector.broadcast %49 : vector<1x32xf32> to vector<8x32xf32>
    %77 = arith.mulf %75, %76 : vector<8x32xf32>
    %78 = vector.broadcast %50 : vector<1x32xf32> to vector<8x32xf32>
    %79 = arith.addf %77, %78 : vector<8x32xf32>
    %cst_33 = arith.constant 0.000000e+00 : f32
    %80 = vector.broadcast %cst_33 : f32 to vector<8x32xf32>
    %81 = arith.maximumf %79, %80 : vector<8x32xf32>
    %cst_34 = arith.constant dense<0xFF800000> : vector<8xf32>
    %82 = vector.multi_reduction <maximumf>, %55, %cst_34 [1] : vector<8x32xf32> to vector<8xf32>
    %83 = vector.shape_cast %82 : vector<8xf32> to vector<8x1xf32>
    %84 = vector.broadcast %83 : vector<8x1xf32> to vector<8x32xf32>
    %85 = arith.subf %55, %84 : vector<8x32xf32>
    %86 = math.exp %85 : vector<8x32xf32>
    %cst_35 = arith.constant dense<0.000000e+00> : vector<8xf32>
    %87 = vector.multi_reduction <add>, %86, %cst_35 [1] : vector<8x32xf32> to vector<8xf32>
    %88 = vector.shape_cast %87 : vector<8xf32> to vector<8x1xf32>
    %89 = tpu.reciprocal %88 {approx = true} : vector<8x1xf32> -> vector<8x1xf32>
    %90 = vector.broadcast %89 : vector<8x1xf32> to vector<8x32xf32>
    %91 = arith.mulf %86, %90 : vector<8x32xf32>
    %92 = arith.mulf %81, %91 : vector<8x32xf32>
    %c0_36 = arith.constant 0 : index
    %c0_37 = arith.constant 0 : index
    %93 = vector.load %arg9[%c0_36, %c0_37] : memref<1x32xf32, #tpu.memory_space<vmem>>, vector<1x32xf32>
    %94 = vector.broadcast %93 : vector<1x32xf32> to vector<8x32xf32>
    %95 = arith.mulf %92, %94 : vector<8x32xf32>
    %cst_38 = arith.constant dense<0.000000e+00> : vector<8xf32>
    %96 = vector.multi_reduction <add>, %95, %cst_38 [1] : vector<8x32xf32> to vector<8xf32>
    %97 = vector.shape_cast %96 : vector<8xf32> to vector<1x8xf32>
    %c0_39 = arith.constant 0 : index
    %c0_40 = arith.constant 0 : index
    %98 = vector.load %arg10[%c0_39, %c0_40] : memref<1x1xf32, #tpu.memory_space<vmem>>, vector<1x1xf32>
    %99 = vector.broadcast %98 : vector<1x1xf32> to vector<1x8xf32>
    %100 = arith.addf %97, %99 : vector<1x8xf32>
    %c0_41 = arith.constant 0 : index
    %c0_42 = arith.constant 0 : index
    %101 = vector.load %arg11[%c0_41, %c0_42] : memref<1x8xf32, #tpu.memory_space<vmem>>, vector<1x8xf32>
    tpu.vector_store %arg11[%c0_41, %c0_42], %100 {strides = array<i32>} : memref<1x8xf32, #tpu.memory_space<vmem>>, vector<1x8xf32>,
    return
  }
}

</mosaic_0001>

<llo_original>
// kernel: tpu_custom_call.1
$region0: #{tpu_custom_call.1}
  #allocation0 [shape = 'u32[]', space=smem, size = 0x4, offset = 0x4, fixed_abs, tag = 'smem constant byte address 0x4 - core index']
  #allocation1 [shape = 'u32[144,128]{1,0:T(1,128)}', space=vmem, size = 0x12000, scoped, tag = 'internal scratch']
  #allocation2 [shape = 'f32[1,1]{1,0:T(1,128)S(1)}', space=vmem, size = 0x200, scoped, tag = 'scoped memory for tpu_custom_call.1']
  %s0 = inlined_call_operand.hbm [shape: f32[8,16], index: 0, kind: input, shape index: {}]
  %s1 = inlined_call_operand.hbm [shape: f32[16,64], index: 1, kind: input, shape index: {}]
  %s2 = inlined_call_operand.vmem [shape: f32[1,64], index: 2, kind: input, shape index: {}]
  %s3 = inlined_call_operand.vmem [shape: f32[1,32], index: 3, kind: input, shape index: {}]
  %s4 = inlined_call_operand.vmem [shape: f32[1,32], index: 4, kind: input, shape index: {}]
  %s5 = inlined_call_operand.hbm [shape: f32[32,64], index: 5, kind: input, shape index: {}]
  %s6 = inlined_call_operand.vmem [shape: f32[1,64], index: 6, kind: input, shape index: {}]
  %s7 = inlined_call_operand.vmem [shape: f32[1,32], index: 7, kind: input, shape index: {}]
  %s8 = inlined_call_operand.vmem [shape: f32[1,32], index: 8, kind: input, shape index: {}]
  %s9 = inlined_call_operand.vmem [shape: f32[1,32], index: 9, kind: input, shape index: {}]
  %s10 = inlined_call_operand.<no memory space> [shape: f32[1,1], index: 10, kind: input, shape index: {}]
  %s11 = inlined_call_operand.hbm [shape: f32[1,8], index: 11, kind: output, shape index: {}]
  %s12 = sld [smem:[#allocation0]]
  $region66: #{tpu_custom_call.1} parent=0
    _
  %s14 = ssub.s32 1, %s12
  %s15 = scalar_select 0, %s14, %s12
  %v16 = vstv %s10
  %17 = vst [vmem:[#allocation2] sm:$0x1] %v16
  $region1: #{tpu_custom_call.1} parent=0
    #allocation3 [shape = 'u8[4096]{0}', space=vmem, size = 0x1000, scoped, tag = 'input window, operand 0, single buffered']
    #allocation4 [shape = 's32[1]{0}', space=sflag, size = 0x4, scoped, tag = 'scoped memory for tpu_custom_call.1']
    #allocation5 [shape = 's32[1]{0}', space=sflag, size = 0x4, scoped, tag = 'scoped memory for tpu_custom_call.1']
    #allocation6 [shape = 'u8[8192]{0}', space=vmem, size = 0x2000, scoped, tag = 'input window, operand 1, single buffered']
    #allocation7 [shape = 's32[1]{0}', space=sflag, size = 0x4, scoped, tag = 'scoped memory for tpu_custom_call.1']
    #allocation8 [shape = 'u8[16384]{0}', space=vmem, size = 0x4000, scoped, tag = 'input window, operand 5, single buffered']
    #allocation9 [shape = 'u8[512]{0}', space=vmem, size = 0x400, scoped, tag = 'output window, operand 0, single buffered']
    %18 = vsyncpa [#allocation4], 0
    %19 = vsyncpa [#allocation7], 0
    %20 = vsyncpa [#allocation5], 0
    // Predicated region
    $region2: #{tpu_custom_call.1} parent=1 // pred_check
      _
    $region3: #{tpu_custom_call.1} parent=1 // pred_check_branch
      %22 = sbr.rel (0) target = $region5
    $region4: #{tpu_custom_call.1} parent=1 // pred_region
      %s24 = ssub.s32 128, 128
      %25 = vsyncadd [#allocation4], %s24
      %s27 = sshll.u32 [#allocation3], 4
      %s28 = int_to_ptr.vmem [resolvable:$true] %s27
      %30 = dma.hbm_to_vmem [thread:$0]  %s0, 128, %s28, [#allocation4]
    $region5: #{tpu_custom_call.1} parent=1 // pred_fallthru
      _
    // Predicated region
    $region6: #{tpu_custom_call.1} parent=1 // pred_check
      _
    $region7: #{tpu_custom_call.1} parent=1 // pred_check_branch
      %32 = sbr.rel (0) target = $region9
    $region8: #{tpu_custom_call.1} parent=1 // pred_region
      %s34 = ssub.s32 256, 256
      %35 = vsyncadd [#allocation7], %s34
      %s36 = sshll.u32 [#allocation6], 4
      %s37 = int_to_ptr.vmem [resolvable:$true] %s36
      %42 = dma.hbm_to_vmem [thread:$0]  %s1, 256, %s37, [#allocation7], 128, 128, 8
    $region9: #{tpu_custom_call.1} parent=1 // pred_fallthru
      _
    // Predicated region
    $region10: #{tpu_custom_call.1} parent=1 // pred_check
      _
    $region11: #{tpu_custom_call.1} parent=1 // pred_check_branch
      %44 = sbr.rel (0) target = $region13
    $region12: #{tpu_custom_call.1} parent=1 // pred_region
      _
    $region13: #{tpu_custom_call.1} parent=1 // pred_fallthru
      _
    // Predicated region
    $region14: #{tpu_custom_call.1} parent=1 // pred_check
      _
    $region15: #{tpu_custom_call.1} parent=1 // pred_check_branch
      %46 = sbr.rel (0) target = $region17
    $region16: #{tpu_custom_call.1} parent=1 // pred_region
      _
    $region17: #{tpu_custom_call.1} parent=1 // pred_fallthru
      _
    // Predicated region
    $region18: #{tpu_custom_call.1} parent=1 // pred_check
      _
    $region19: #{tpu_custom_call.1} parent=1 // pred_check_branch
      %48 = sbr.rel (0) target = $region21
    $region20: #{tpu_custom_call.1} parent=1 // pred_region
      _
    $region21: #{tpu_custom_call.1} parent=1 // pred_fallthru
      _
    // Predicated region
    $region22: #{tpu_custom_call.1} parent=1 // pred_check
      _
    $region23: #{tpu_custom_call.1} parent=1 // pred_check_branch
      %50 = sbr.rel (0) target = $region25
    $region24: #{tpu_custom_call.1} parent=1 // pred_region
      %s52 = ssub.s32 512, 512
      %53 = vsyncadd [#allocation7], %s52
      %s54 = sshll.u32 [#allocation8], 4
      %s55 = int_to_ptr.vmem [resolvable:$true] %s54
      %60 = dma.hbm_to_vmem [thread:$0]  %s5, 512, %s55, [#allocation7], 128, 128, 8
    $region25: #{tpu_custom_call.1} parent=1 // pred_fallthru
      _
    // Predicated region
    $region26: #{tpu_custom_call.1} parent=1 // pred_check
      _
    $region27: #{tpu_custom_call.1} parent=1 // pred_check_branch
      %62 = sbr.rel (0) target = $region29
    $region28: #{tpu_custom_call.1} parent=1 // pred_region
      _
    $region29: #{tpu_custom_call.1} parent=1 // pred_fallthru
      _
    // Predicated region
    $region30: #{tpu_custom_call.1} parent=1 // pred_check
      _
    $region31: #{tpu_custom_call.1} parent=1 // pred_check_branch
      %64 = sbr.rel (0) target = $region33
    $region32: #{tpu_custom_call.1} parent=1 // pred_region
      _
    $region33: #{tpu_custom_call.1} parent=1 // pred_fallthru
      _
    // Predicated region
    $region34: #{tpu_custom_call.1} parent=1 // pred_check
      _
    $region35: #{tpu_custom_call.1} parent=1 // pred_check_branch
      %66 = sbr.rel (0) target = $region37
    $region36: #{tpu_custom_call.1} parent=1 // pred_region
      _
    $region37: #{tpu_custom_call.1} parent=1 // pred_fallthru
      _
    // Predicated region
    $region38: #{tpu_custom_call.1} parent=1 // pred_check
      _
    $region39: #{tpu_custom_call.1} parent=1 // pred_check_branch
      %68 = sbr.rel (0) target = $region41
    $region40: #{tpu_custom_call.1} parent=1 // pred_region
      _
    $region41: #{tpu_custom_call.1} parent=1 // pred_fallthru
      _
    // Predicated region
    $region42: #{tpu_custom_call.1} parent=1 // pred_check
      _
    $region43: #{tpu_custom_call.1} parent=1 // pred_check_branch
      %70 = sbr.rel (0) target = $region45
    $region44: #{tpu_custom_call.1} parent=1 // pred_region
      _
    $region45: #{tpu_custom_call.1} parent=1 // pred_fallthru
      _
    // Predicated region
    $region46: #{tpu_custom_call.1} parent=1 // pred_check
      _
    $region47: #{tpu_custom_call.1} parent=1 // pred_check_branch
      %72 = sbr.rel (0) target = $region49
    $region48: #{tpu_custom_call.1} parent=1 // pred_region
      %73 = dma.done [#allocation4], 128
    $region49: #{tpu_custom_call.1} parent=1 // pred_fallthru
      _
    // Predicated region
    $region50: #{tpu_custom_call.1} parent=1 // pred_check
      _
    $region51: #{tpu_custom_call.1} parent=1 // pred_check_branch
      %75 = sbr.rel (0) target = $region53
    $region52: #{tpu_custom_call.1} parent=1 // pred_region
      %76 = dma.done [#allocation7], 256
    $region53: #{tpu_custom_call.1} parent=1 // pred_fallthru
      _
    // Predicated region
    $region54: #{tpu_custom_call.1} parent=1 // pred_check
      _
    $region55: #{tpu_custom_call.1} parent=1 // pred_check_branch
      %78 = sbr.rel (0) target = $region57
    $region56: #{tpu_custom_call.1} parent=1 // pred_region
      %79 = dma.done [#allocation7], 512
    $region57: #{tpu_custom_call.1} parent=1 // pred_fallthru
      _
    %v80 = vld [vmem:[#allocation3] sm:$0xff]
    %v81 = vld [vmem:[#allocation6] sm:$0xff]
    %v82 = vld [vmem:[#allocation6 + $0x8] sm:$0xff]
    %v83 = vld [vmem:[%s2] sm:$0x1]
    %v84 = vld [vmem:[%s3] sm:$0x1]
    %v85 = vld [vmem:[%s4] sm:$0x1]
    %v87 = vlaneseq
    %v88 = vshrl.u32 %v87, 7
    %v89 = vsub.s32 0, %v88
    %v90 = vrot.slane %v83, %v89
    %vm92 = vcmask 130048
    %v94 = vsel %vm92, %v80, 0
    %96 = vmatprep.subr.mxu0 0.0
    %97 = vmatpush1.msra.mxu0 0.0
    %98 = vmatprep.subr.mxu0 0.0
    %99 = vmatpush1.msra.mxu0 0.0
    %100 = vmatprep.subr.mxu0 0.0
    %101 = vmatpush1.msra.mxu0 0.0
    %102 = vmatprep.subr.mxu0 0.0
    %103 = vmatpush1.msra.mxu0 0.0
    %104 = vmatprep.subr.mxu0 0.0
    %105 = vmatpush1.msra.mxu0 0.0
    %106 = vmatprep.subr.mxu0 0.0
    %107 = vmatpush1.msra.mxu0 0.0
    %108 = vmatprep.subr.mxu0 0.0
    %109 = vmatpush1.msra.mxu0 0.0
    %110 = vmatprep.subr.mxu0 0.0
    %111 = vmatpush1.msra.mxu0 0.0
    %112 = vmatprep.subr.mxu0 0.0
    %113 = vmatpush1.msra.mxu0 0.0
    %114 = vmatprep.subr.mxu0 0.0
    %115 = vmatpush1.msra.mxu0 0.0
    %116 = vmatprep.subr.mxu0 0.0
    %117 = vmatpush1.msra.mxu0 0.0
    %118 = vmatprep.subr.mxu0 0.0
    %119 = vmatpush1.msra.mxu0 0.0
    %120 = vmatprep.subr.mxu0 0.0
    %121 = vmatpush1.msra.mxu0 0.0
    %122 = vmatprep.subr.mxu0 0.0
    %123 = vmatpush1.msra.mxu0 0.0
    %124 = vmatprep.subr.mxu0 0.0
    %125 = vmatpush1.msra.mxu0 %v82
    %126 = vmatprep.subr.mxu0 0.0
    %127 = vmatpush1.msra.mxu0 %v81
    %128 = vmatprep.subr.mxu0 0.0
    %129 = vmatpush2.msra.mxu0 0.0
    %130 = vmatprep.subr.mxu0 0.0
    %131 = vmatpush2.msra.mxu0 0.0
    %132 = vmatprep.subr.mxu0 0.0
    %133 = vmatpush2.msra.mxu0 0.0
    %134 = vmatprep.subr.mxu0 0.0
    %135 = vmatpush2.msra.mxu0 0.0
    %136 = vmatprep.subr.mxu0 0.0
    %137 = vmatpush2.msra.mxu0 0.0
    %138 = vmatprep.subr.mxu0 0.0
    %139 = vmatpush2.msra.mxu0 0.0
    %140 = vmatprep.subr.mxu0 0.0
    %141 = vmatpush2.msra.mxu0 0.0
    %142 = vmatprep.subr.mxu0 0.0
    %143 = vmatpush2.msra.mxu0 0.0
    %144 = vmatprep.subr.mxu0 0.0
    %145 = vmatpush2.msra.mxu0 0.0
    %146 = vmatprep.subr.mxu0 0.0
    %147 = vmatpush2.msra.mxu0 0.0
    %148 = vmatprep.subr.mxu0 0.0
    %149 = vmatpush2.msra.mxu0 0.0
    %150 = vmatprep.subr.mxu0 0.0
    %151 = vmatpush2.msra.mxu0 0.0
    %152 = vmatprep.subr.mxu0 0.0
    %153 = vmatpush2.msra.mxu0 0.0
    %154 = vmatprep.subr.mxu0 0.0
    %155 = vmatpush2.msra.mxu0 0.0
    %156 = vmatprep.subr.mxu0 0.0
    %157 = vmatpush2.msra.mxu0 0.0
    %158 = vmatprep.subr.mxu0 0.0
    %159 = vmatpush2.msra.mxu0 0.0
    %160 = vmatprep.mubr.f32.mxu0 0.0
    %161 = vmatmul.mubr.f32.gmra.mxu0 %v94
    %v162 = vpop.f32.mrf.mxu0
    %v163 = vadd.f32 %v90, %v162
    %v164 = vpop.f32.mrf.mxu0
    %165 = vdwg.mxu0
    %vm166 = vcmask 261120
    %v167 = vsel %vm166, %v163, 0.0
    %v168 = vrot.slane %v167, 4
    %v169 = vadd.f32 %v167, %v168
    %v170 = vrot.slane %v169, 2
    %v171 = vadd.f32 %v169, %v170
    %v172 = vrot.slane %v171, 1
    %v173 = vadd.f32 %v171, %v172
    %v174 = vmul.f32 %v173, 0.125
    %v175 = vmul.f32 %v163, %v163
    %v176 = vsel %vm166, %v175, 0.0
    %v177 = vrot.slane %v176, 4
    %v178 = vadd.f32 %v176, %v177
    %v179 = vrot.slane %v178, 2
    %v180 = vadd.f32 %v178, %v179
    %v181 = vrot.slane %v180, 1
    %v182 = vadd.f32 %v180, %v181
    %v183 = vmul.f32 %v182, 0.125
    %v184 = vmul.f32 %v174, %v174
    %v185 = vsub.f32 %v183, %v184
    %v186 = vmax.f32 %v185, 0.0
    %v187 = vsub.f32 %v163, %v174
    %v188 = vadd.f32 %v186, 1e-05
    %v189 = vrsqrt.pop %v188
    %v190 = vmul.f32 %v187, %v189
    %v192 = vlaneseq
    %v193 = vshrl.u32 %v192, 7
    %v194 = vsub.s32 0, %v193
    %v195 = vrot.slane %v84, %v194
    %v197 = vmul.f32 %v190, %v195
    %v199 = vlaneseq
    %v200 = vshrl.u32 %v199, 7
    %v201 = vsub.s32 0, %v200
    %v202 = vrot.slane %v85, %v201
    %v204 = vadd.f32 %v197, %v202
    %v205 = vmax.f32 %v204, 0.0
    %vm206 = vcmask 523520
    %v207 = vsel %vm206, %v163, -inf
    %208 = vmax.xlane.f32.xlu0 %v207
    %v209 = vpop.xlane.xlu0 %208
    %v210 = vsub.f32 %v163, %v209
    %v211 = vmul.f32 %v210, 1.442695
    %v212 = vpow.pop %v211
    %214 = vrot.lane.b32.xlu0 %v212, 96
    %v215 = vpop.permute.xlu0 %214
    %v217 = vsel %vm166, %v215, 0.0
    %218 = vadd.xlane.f32.xlu0 %v217
    %v219 = vpop.xlane.xlu0 %218
    %v220 = vrcp.pop %v219
    %v221 = vmul.f32 %v212, %v220
    %223 = vrot.lane.b32.xlu0 %v221, 96
    %v224 = vpop.permute.xlu0 %223
    %v226 = vmul.f32 %v205, %v224
    %v227 = vld [vmem:[#allocation8] sm:$0xff]
    %v228 = vld [vmem:[#allocation8 + $0x8] sm:$0xff]
    %v229 = vld [vmem:[#allocation8 + $0x10] sm:$0xff]
    %v230 = vld [vmem:[#allocation8 + $0x18] sm:$0xff]
    %v231 = vld [vmem:[%s6] sm:$0x1]
    %v232 = vld [vmem:[%s7] sm:$0x1]
    %v233 = vld [vmem:[%s8] sm:$0x1]
    %v235 = vlaneseq
    %v236 = vshrl.u32 %v235, 7
    %v237 = vsub.s32 0, %v236
    %v238 = vrot.slane %v231, %v237
    %v241 = vsel %vm166, %v226, 0
    %243 = vmatprep.subr.mxu0 0.0
    %244 = vmatpush1.msra.mxu0 0.0
    %245 = vmatprep.subr.mxu0 0.0
    %246 = vmatpush1.msra.mxu0 0.0
    %247 = vmatprep.subr.mxu0 0.0
    %248 = vmatpush1.msra.mxu0 0.0
    %249 = vmatprep.subr.mxu0 0.0
    %250 = vmatpush1.msra.mxu0 0.0
    %251 = vmatprep.subr.mxu0 0.0
    %252 = vmatpush1.msra.mxu0 0.0
    %253 = vmatprep.subr.mxu0 0.0
    %254 = vmatpush1.msra.mxu0 0.0
    %255 = vmatprep.subr.mxu0 0.0
    %256 = vmatpush1.msra.mxu0 0.0
    %257 = vmatprep.subr.mxu0 0.0
    %258 = vmatpush1.msra.mxu0 0.0
    %259 = vmatprep.subr.mxu0 0.0
    %260 = vmatpush1.msra.mxu0 0.0
    %261 = vmatprep.subr.mxu0 0.0
    %262 = vmatpush1.msra.mxu0 0.0
    %263 = vmatprep.subr.mxu0 0.0
    %264 = vmatpush1.msra.mxu0 0.0
    %265 = vmatprep.subr.mxu0 0.0
    %266 = vmatpush1.msra.mxu0 0.0
    %267 = vmatprep.subr.mxu0 0.0
    %268 = vmatpush1.msra.mxu0 %v230
    %269 = vmatprep.subr.mxu0 0.0
    %270 = vmatpush1.msra.mxu0 %v229
    %271 = vmatprep.subr.mxu0 0.0
    %272 = vmatpush1.msra.mxu0 %v228
    %273 = vmatprep.subr.mxu0 0.0
    %274 = vmatpush1.msra.mxu0 %v227
    %275 = vmatprep.subr.mxu0 0.0
    %276 = vmatpush2.msra.mxu0 0.0
    %277 = vmatprep.subr.mxu0 0.0
    %278 = vmatpush2.msra.mxu0 0.0
    %279 = vmatprep.subr.mxu0 0.0
    %280 = vmatpush2.msra.mxu0 0.0
    %281 = vmatprep.subr.mxu0 0.0
    %282 = vmatpush2.msra.mxu0 0.0
    %283 = vmatprep.subr.mxu0 0.0
    %284 = vmatpush2.msra.mxu0 0.0
    %285 = vmatprep.subr.mxu0 0.0
    %286 = vmatpush2.msra.mxu0 0.0
    %287 = vmatprep.subr.mxu0 0.0
    %288 = vmatpush2.msra.mxu0 0.0
    %289 = vmatprep.subr.mxu0 0.0
    %290 = vmatpush2.msra.mxu0 0.0
    %291 = vmatprep.subr.mxu0 0.0
    %292 = vmatpush2.msra.mxu0 0.0
    %293 = vmatprep.subr.mxu0 0.0
    %294 = vmatpush2.msra.mxu0 0.0
    %295 = vmatprep.subr.mxu0 0.0
    %296 = vmatpush2.msra.mxu0 0.0
    %297 = vmatprep.subr.mxu0 0.0
    %298 = vmatpush2.msra.mxu0 0.0
    %299 = vmatprep.subr.mxu0 0.0
    %300 = vmatpush2.msra.mxu0 0.0
    %301 = vmatprep.subr.mxu0 0.0
    %302 = vmatpush2.msra.mxu0 0.0
    %303 = vmatprep.subr.mxu0 0.0
    %304 = vmatpush2.msra.mxu0 0.0
    %305 = vmatprep.subr.mxu0 0.0
    %306 = vmatpush2.msra.mxu0 0.0
    %307 = vmatprep.mubr.f32.mxu0 0.0
    %308 = vmatmul.mubr.f32.gmra.mxu0 %v241
    %v309 = vpop.f32.mrf.mxu0
    %v310 = vadd.f32 %v238, %v309
    %v311 = vpop.f32.mrf.mxu0
    %312 = vdwg.mxu0
    %v313 = vsel %vm166, %v310, 0.0
    %v314 = vrot.slane %v313, 4
    %v315 = vadd.f32 %v313, %v314
    %v316 = vrot.slane %v315, 2
    %v317 = vadd.f32 %v315, %v316
    %v318 = vrot.slane %v317, 1
    %v319 = vadd.f32 %v317, %v318
    %v320 = vmul.f32 %v319, 0.125
    %v321 = vmul.f32 %v310, %v310
    %v322 = vsel %vm166, %v321, 0.0
    %v323 = vrot.slane %v322, 4
    %v324 = vadd.f32 %v322, %v323
    %v325 = vrot.slane %v324, 2
    %v326 = vadd.f32 %v324, %v325
    %v327 = vrot.slane %v326, 1
    %v328 = vadd.f32 %v326, %v327
    %v329 = vmul.f32 %v328, 0.125
    %v330 = vmul.f32 %v320, %v320
    %v331 = vsub.f32 %v329, %v330
    %v332 = vmax.f32 %v331, 0.0
    %v333 = vsub.f32 %v310, %v320
    %v334 = vadd.f32 %v332, 1e-05
    %v335 = vrsqrt.pop %v334
    %v336 = vmul.f32 %v333, %v335
    %v338 = vlaneseq
    %v339 = vshrl.u32 %v338, 7
    %v340 = vsub.s32 0, %v339
    %v341 = vrot.slane %v232, %v340
    %v343 = vmul.f32 %v336, %v341
    %v345 = vlaneseq
    %v346 = vshrl.u32 %v345, 7
    %v347 = vsub.s32 0, %v346
    %v348 = vrot.slane %v233, %v347
    %v350 = vadd.f32 %v343, %v348
    %v351 = vmax.f32 %v350, 0.0
    %v352 = vsel %vm206, %v310, -inf
    %353 = vmax.xlane.f32.xlu0 %v352
    %v354 = vpop.xlane.xlu0 %353
    %v355 = vsub.f32 %v310, %v354
    %v356 = vmul.f32 %v355, 1.442695
    %v357 = vpow.pop %v356
    %359 = vrot.lane.b32.xlu0 %v357, 96
    %v360 = vpop.permute.xlu0 %359
    %v362 = vsel %vm166, %v360, 0.0
    %363 = vadd.xlane.f32.xlu0 %v362
    %v364 = vpop.xlane.xlu0 %363
    %v365 = vrcp.pop %v364
    %v366 = vmul.f32 %v357, %v365
    %368 = vrot.lane.b32.xlu0 %v366, 96
    %v369 = vpop.permute.xlu0 %368
    %v371 = vmul.f32 %v351, %v369
    %v372 = vld [vmem:[%s9] sm:$0x1]
    %v374 = vlaneseq
    %v375 = vshrl.u32 %v374, 7
    %v376 = vsub.s32 0, %v375
    %v377 = vrot.slane %v372, %v376
    %v379 = vmul.f32 %v371, %v377
    %v380 = vsel %vm166, %v379, 0.0
    %381 = vadd.xlane.f32.xlu0 %v380
    %v382 = vpop.xlane.xlu0 %381
    %v383 = vld [vmem:[#allocation2] sm:$0x1]
    %385 = vset.pattern.permute.xlu0 0
    %386 = vperm.xlu0 %385, %v383
    %v387 = vpop.permute.xlu0 %386
    %v389 = vlaneseq
    %v390 = vshrl.u32 %v389, 7
    %v391 = vsub.s32 0, %v390
    %v392 = vrot.slane %v387, %v391
    %v393 = vadd.f32 %v382, %v392
    %v395 = vlaneseq
    %v396 = vand.u32 %v395, 127
    %v397 = vlaneseq
    %v398 = vshrl.u32 %v397, 7
    %v399 = vsub.s32 %v396, %v398
    %v400 = vrot.slane %v393, %v399
    %vm402 = vcmask 57344
    %403 = vst.msk [vmem:[#allocation9] sm:$0x1] %vm402, %v400
    // Predicated region
    $region58: #{tpu_custom_call.1} parent=1 // pred_check
      _
    $region59: #{tpu_custom_call.1} parent=1 // pred_check_branch
      %405 = sbr.rel (0) target = $region61
    $region60: #{tpu_custom_call.1} parent=1 // pred_region
      %s407 = ssub.s32 16, 16
      %408 = vsyncadd [#allocation5], %s407
      %s410 = sshll.u32 [#allocation9], 4
      %s411 = int_to_ptr.vmem [resolvable:$true] %s410
      %413 = dma.vmem_to_hbm [thread:$0]  %s411, 16, %s11, [#allocation5]
    $region61: #{tpu_custom_call.1} parent=1 // pred_fallthru
      _
    // Predicated region
    $region62: #{tpu_custom_call.1} parent=1 // pred_check
      _
    $region63: #{tpu_custom_call.1} parent=1 // pred_check_branch
      %415 = sbr.rel (0) target = $region65
    $region64: #{tpu_custom_call.1} parent=1 // pred_region
      %416 = dma.done [#allocation5], 16
    $region65: #{tpu_custom_call.1} parent=1 // pred_fallthru
      _
    %417 = vsyncpa [#allocation4], 1
    %418 = vsyncpa [#allocation7], 1
    %419 = vsyncpa [#allocation5], 1

</llo_original>
